<compile_context>
chip_gen: v6e
topology: v6e:2x2x1
jax: 0.10.0
libtpu: 0.0.40
codegen_flags: <defaults>
</compile_context>

<pallas_src>
import numpy as np
import jax
import jax.numpy as jnp
from jax.experimental import pallas as pl
from jax.experimental.pallas import tpu as pltpu


def build_pe_table(d_model: int, max_seq_len: int) -> np.ndarray:
    """Reproduces PositionalEncoding.__init__: sinusoidal table + zero pad row at index 0."""
    pe = np.array(
        [[pos / np.power(10000, 2.0 * (j // 2) / d_model) for j in range(d_model)]
         for pos in range(max_seq_len)]
    )
    pe[:, 0::2] = np.sin(pe[:, 0::2])
    pe[:, 1::2] = np.cos(pe[:, 1::2])
    pe = pe.astype(np.float32)
    pad_row = np.zeros((1, d_model), dtype=np.float32)
    return np.concatenate([pad_row, pe], axis=0)  # [max_seq_len + 1, d_model]


def _pe_kernel(len_ref, pos_idx_ref, pe_ref, out_ref):
    # len_ref:     VMEM i32 [TB, 1]   -- this tile's sequence lengths
    # pos_idx_ref: VMEM i32 [1, F]    -- column -> sequence position index (resident)
    # pe_ref:      VMEM f32 [1, F]    -- flattened PE rows for positions 1..max_pos (resident)
    # out_ref:     VMEM f32 [TB, F]   -- lane-dense flattened output tile
    mask = pos_idx_ref[...] < len_ref[...]                       # (TB, F) via broadcast
    out_ref[...] = jnp.where(mask, pe_ref[...], jnp.float32(0.0))


def _choose_tb(batch: int, row_bytes: int, target_bytes: int = 2 << 20) -> int:
    """Rows of the flattened output per grid step.

    Targets ~2 MiB per (double-buffered) output block so the HBM writeback runs near
    roofline, keeps the sublane dim a multiple of 8 (or the full batch), and keeps
    >= 2 grid steps for non-trivial batches so both v7x TensorCores get work under
    dimension_semantics=("parallel",).
    """
    if batch < 16:
        return batch  # single block; block dims == array dims satisfy the (8,128) rule
    tb = max(8, (min(batch, target_bytes // max(row_bytes, 1)) // 8) * 8)
    if pl.cdiv(batch, tb) < 2:
        tb = max(8, (((batch + 1) // 2) // 8) * 8)
    return tb


def make_positional_encoding(pe_table: jax.Array):
    """One-time preparation (hoisted out of the per-call path): drop the pad row and flatten
    the table to a lane-dense (1, max_pos*d_model) slab; precompute the column->position row."""
    max_pos = int(pe_table.shape[0]) - 1
    d_model = int(pe_table.shape[1])
    flat = max_pos * d_model
    pe_flat = jnp.asarray(pe_table)[1:].reshape(1, flat)  # row i of body == PE(position i+1)
    pos_idx = jnp.repeat(jnp.arange(max_pos, dtype=jnp.int32), d_model).reshape(1, flat)

    def positional_encoding(input_len: jax.Array):
        """input_len: int [B] -> (PE [B, max_pos, d_model] f32, position ids [B, max_pos] i32)."""
        batch = input_len.shape[0]
        lens = input_len.astype(jnp.int32)

        tb = _choose_tb(batch, row_bytes=flat * 4)
        num_blocks = pl.cdiv(batch, tb)
        b_pad = num_blocks * tb
        lens_padded = lens if b_pad == batch else jnp.pad(lens, (0, b_pad - batch))
        lens_2d = lens_padded.reshape(b_pad, 1)

        out_flat = pl.pallas_call(
            _pe_kernel,
            out_shape=jax.ShapeDtypeStruct((b_pad, flat), jnp.float32),
            grid=(num_blocks,),
            in_specs=[
                pl.BlockSpec((tb, 1), lambda b: (b, 0)),     # per-tile lengths
                pl.BlockSpec((1, flat), lambda b: (0, 0)),   # resident position-index row
                pl.BlockSpec((1, flat), lambda b: (0, 0)),   # resident flattened PE table
            ],
            out_specs=pl.BlockSpec((tb, flat), lambda b: (b, 0)),
            compiler_params=pltpu.CompilerParams(
                dimension_semantics=("parallel",),
            ),
        )(lens_2d, pos_idx, pe_flat)

        out_pe = out_flat[:batch].reshape(batch, max_pos, d_model)

        # Position ids are tiny (B x max_pos int32); computing them with plain jnp keeps the
        # Pallas store path single and lane-dense (per perf review).
        col = jax.lax.broadcasted_iota(jnp.int32, (batch, max_pos), 1)
        out_pos = jnp.where(col < lens[:, None], col + 1, 0)
        return out_pe, out_pos

    return positional_encoding


def reference(input_len: np.ndarray, pe_table: np.ndarray):
    B = input_len.shape[0]
    max_pos = pe_table.shape[0] - 1
    pos = np.zeros((B, max_pos), dtype=np.int64)
    for ind, length in enumerate(input_len):
        for pos_ind in range(1, int(length) + 1):
            pos[ind, pos_ind - 1] = pos_ind
    return pe_table[pos], pos


# TODO(synk): the rest of HitaNet.forward (embedding MLP, multi-head attention block,
# time/self/query weighted pooling, output MLP) is not kernelized here; this file covers
# the PositionalEncoding sub-module, as before.

if __name__ == "__main__":
    d_model = 32
    max_seq_len = 16
    batch = 4

    pe_table_np = build_pe_table(d_model, max_seq_len)
    pe_fn = make_positional_encoding(jnp.asarray(pe_table_np))

    key = jax.random.PRNGKey(0)
    input_len = jax.random.randint(key, (batch,), 1, max_seq_len + 1, dtype=jnp.int32)

    out_pe, out_pos = pe_fn(input_len)
    out_pe = jax.block_until_ready(out_pe)
    out_pos = jax.block_until_ready(out_pos)

    ref_pe, ref_pos = reference(np.asarray(input_len), pe_table_np)
    np.testing.assert_allclose(np.asarray(out_pe), ref_pe, rtol=1e-6, atol=1e-6)
    np.testing.assert_array_equal(np.asarray(out_pos), ref_pos.astype(np.int32))

    print("KERNEL_OK")
</pallas_src>

<mosaic_0001>
module attributes {stable_mosaic.version = 11 : i64} {
  func.func @_pe_kernel(%arg0: i32, %arg1: memref<4x1xi32, #tpu.memory_space<vmem>>, %arg2: memref<1x512xi32, #tpu.memory_space<vmem>>, %arg3: memref<1x512xf32, #tpu.memory_space<vmem>>, %arg4: memref<4x512xf32, #tpu.memory_space<vmem>>) attributes {dimension_semantics = [#tpu.dimension_semantics<parallel>], iteration_bounds = array<i64: 1>, scalar_prefetch = 0 : i64, scratch_operands = 0 : i64, tpu.core_type = #tpu.core_type<tc>, window_params = [{transform_indices = @transform_0, window_bounds = array<i64: 4, 1>}, {pipeline_mode = #tpu.pipeline_mode<synchronous>, transform_indices = @transform_1, window_bounds = array<i64: 1, 512>}, {pipeline_mode = #tpu.pipeline_mode<synchronous>, transform_indices = @transform_2, window_bounds = array<i64: 1, 512>}, {transform_indices = @transform_3, window_bounds = array<i64: 4, 512>}]} {
    %c0 = arith.constant 0 : index
    %c0_0 = arith.constant 0 : index
    %0 = vector.load %arg2[%c0, %c0_0] : memref<1x512xi32, #tpu.memory_space<vmem>>, vector<1x512xi32>
    %c0_1 = arith.constant 0 : index
    %c0_2 = arith.constant 0 : index
    %1 = vector.load %arg1[%c0_1, %c0_2] : memref<4x1xi32, #tpu.memory_space<vmem>>, vector<4x1xi32>
    %2 = vector.broadcast %0 : vector<1x512xi32> to vector<4x512xi32>
    %3 = vector.broadcast %1 : vector<4x1xi32> to vector<4x512xi32>
    %4 = arith.cmpi slt, %2, %3 : vector<4x512xi32>
    %c0_3 = arith.constant 0 : index
    %c0_4 = arith.constant 0 : index
    %5 = vector.load %arg3[%c0_3, %c0_4] : memref<1x512xf32, #tpu.memory_space<vmem>>, vector<1x512xf32>
    %cst = arith.constant 0.000000e+00 : f32
    %6 = vector.shape_cast %5 : vector<1x512xf32> to vector<1x512xf32>
    %7 = vector.broadcast %6 : vector<1x512xf32> to vector<4x512xf32>
    %8 = vector.broadcast %cst : f32 to vector<4x512xf32>
    %9 = arith.select %4, %7, %8 : vector<4x512xi1>, vector<4x512xf32>
    %c0_5 = arith.constant 0 : index
    %c0_6 = arith.constant 0 : index
    %10 = vector.load %arg4[%c0_5, %c0_6] : memref<4x512xf32, #tpu.memory_space<vmem>>, vector<4x512xf32>
    tpu.vector_store %arg4[%c0_5, %c0_6], %9 {strides = array<i32>} : memref<4x512xf32, #tpu.memory_space<vmem>>, vector<4x512xf32>,
    return
  }
  func.func @transform_0(%arg0: i32) -> (i32, i32) {
    %c0_i32 = arith.constant 0 : i32
    %c0_i32_0 = arith.constant 0 : i32
    return %arg0, %c0_i32 : i32, i32
  }
  func.func @transform_1(%arg0: i32) -> (i32, i32) {
    %c0_i32 = arith.constant 0 : i32
    %c0_i32_0 = arith.constant 0 : i32
    %c0_i32_1 = arith.constant 0 : i32
    return %c0_i32, %c0_i32_0 : i32, i32
  }
  func.func @transform_2(%arg0: i32) -> (i32, i32) {
    %c0_i32 = arith.constant 0 : i32
    %c0_i32_0 = arith.constant 0 : i32
    %c0_i32_1 = arith.constant 0 : i32
    return %c0_i32, %c0_i32_0 : i32, i32
  }
  func.func @transform_3(%arg0: i32) -> (i32, i32) {
    %c0_i32 = arith.constant 0 : i32
    %c0_i32_0 = arith.constant 0 : i32
    return %arg0, %c0_i32 : i32, i32
  }
}

</mosaic_0001>

<llo_original>
// kernel: tpu_custom_call.1
$region0: #{tpu_custom_call.1}
  #allocation0 [shape = 'u32[]', space=smem, size = 0x4, offset = 0x4, fixed_abs, tag = 'smem constant byte address 0x4 - core index']
  #allocation1 [shape = 'u32[144,128]{1,0:T(1,128)}', space=vmem, size = 0x12000, scoped, tag = 'internal scratch']
  %s0 = inlined_call_operand.vmem [shape: s32[4,1], index: 0, kind: input, shape index: {}]
  %s1 = inlined_call_operand.vmem [shape: s32[1,512], index: 1, kind: input, shape index: {}]
  %s2 = inlined_call_operand.vmem [shape: f32[1,512], index: 2, kind: input, shape index: {}]
  %s3 = inlined_call_operand.hbm [shape: f32[4,512], index: 3, kind: output, shape index: {}]
  %s4 = sld [smem:[#allocation0]]
  $region22: #{tpu_custom_call.1} parent=0
    _
  %s6 = ssub.s32 1, %s4
  %s7 = scalar_select 0, %s6, %s4
  $region1: #{tpu_custom_call.1} parent=0
    #allocation2 [shape = 'u8[8192]{0}', space=vmem, size = 0x2000, scoped, tag = 'output window, operand 0, single buffered']
    #allocation3 [shape = 's32[1]{0}', space=sflag, size = 0x4, scoped, tag = 'scoped memory for tpu_custom_call.1']
    %8 = vsyncpa [#allocation3], 0
    // Predicated region
    $region2: #{tpu_custom_call.1} parent=1 // pred_check
      _
    $region3: #{tpu_custom_call.1} parent=1 // pred_check_branch
      %10 = sbr.rel (0) target = $region5
    $region4: #{tpu_custom_call.1} parent=1 // pred_region
      _
    $region5: #{tpu_custom_call.1} parent=1 // pred_fallthru
      _
    // Predicated region
    $region6: #{tpu_custom_call.1} parent=1 // pred_check
      _
    $region7: #{tpu_custom_call.1} parent=1 // pred_check_branch
      %12 = sbr.rel (0) target = $region9
    $region8: #{tpu_custom_call.1} parent=1 // pred_region
      _
    $region9: #{tpu_custom_call.1} parent=1 // pred_fallthru
      _
    // Predicated region
    $region10: #{tpu_custom_call.1} parent=1 // pred_check
      _
    $region11: #{tpu_custom_call.1} parent=1 // pred_check_branch
      %14 = sbr.rel (0) target = $region13
    $region12: #{tpu_custom_call.1} parent=1 // pred_region
      _
    $region13: #{tpu_custom_call.1} parent=1 // pred_fallthru
      _
    %v15 = vld [vmem:[%s1] sm:$0xf]
    %v16 = vld [vmem:[%s0] sm:$0xf]
    %v17 = vlaneseq
    %v18 = vshrl.u32 %v17, 7
    %v19 = vsub.s32 0, %v18
    %v20 = vrot.slane %v15, %v19
    %v21 = vlaneseq
    %v22 = vshrl.u32 %v21, 7
    %v23 = vsub.s32 1, %v22
    %v24 = vrot.slane %v15, %v23
    %v25 = vlaneseq
    %v26 = vshrl.u32 %v25, 7
    %v27 = vsub.s32 2, %v26
    %v28 = vrot.slane %v15, %v27
    %v29 = vlaneseq
    %v30 = vshrl.u32 %v29, 7
    %v31 = vsub.s32 3, %v30
    %v32 = vrot.slane %v15, %v31
    %33 = vset.pattern.permute.xlu0 0
    %34 = vperm.xlu0 %33, %v16
    %v35 = vpop.permute.xlu0 %34
    %vm36 = vcmp.lt.s32.totalorder %v20, %v35
    %vm37 = vcmp.lt.s32.totalorder %v24, %v35
    %vm38 = vcmp.lt.s32.totalorder %v28, %v35
    %vm39 = vcmp.lt.s32.totalorder %v32, %v35
    %v40 = vld [vmem:[%s2] sm:$0xf]
    %v42 = vlaneseq
    %v43 = vshrl.u32 %v42, 7
    %v44 = vsub.s32 0, %v43
    %v45 = vrot.slane %v40, %v44
    %v46 = vlaneseq
    %v47 = vshrl.u32 %v46, 7
    %v48 = vsub.s32 1, %v47
    %v49 = vrot.slane %v40, %v48
    %v50 = vlaneseq
    %v51 = vshrl.u32 %v50, 7
    %v52 = vsub.s32 2, %v51
    %v53 = vrot.slane %v40, %v52
    %v54 = vlaneseq
    %v55 = vshrl.u32 %v54, 7
    %v56 = vsub.s32 3, %v55
    %v57 = vrot.slane %v40, %v56
    %v62 = vsel %vm36, %v45, 0.0
    %v63 = vsel %vm37, %v49, 0.0
    %v64 = vsel %vm38, %v53, 0.0
    %v65 = vsel %vm39, %v57, 0.0
    %v70 = vcombine.low %v62, %v63
    %v71 = vcombine.low %v64, %v65
    %74 = vst [vmem:[#allocation2] sm:$0xff] %v70
    %75 = vst [vmem:[#allocation2 + $0x8] sm:$0xff] %v71
    // Predicated region
    $region14: #{tpu_custom_call.1} parent=1 // pred_check
      _
    $region15: #{tpu_custom_call.1} parent=1 // pred_check_branch
      %77 = sbr.rel (0) target = $region17
    $region16: #{tpu_custom_call.1} parent=1 // pred_region
      %s79 = ssub.s32 256, 256
      %80 = vsyncadd [#allocation3], %s79
      %s82 = sshll.u32 [#allocation2], 4
      %s83 = int_to_ptr.vmem [resolvable:$true] %s82
      %85 = dma.vmem_to_hbm [thread:$0]  %s83, 256, %s3, [#allocation3]
    $region17: #{tpu_custom_call.1} parent=1 // pred_fallthru
      _
    // Predicated region
    $region18: #{tpu_custom_call.1} parent=1 // pred_check
      _
    $region19: #{tpu_custom_call.1} parent=1 // pred_check_branch
      %87 = sbr.rel (0) target = $region21
    $region20: #{tpu_custom_call.1} parent=1 // pred_region
      %88 = dma.done [#allocation3], 256
    $region21: #{tpu_custom_call.1} parent=1 // pred_fallthru
      _
    %89 = vsyncpa [#allocation3], 1

</llo_original>
